<compile_context>
chip_gen: v7x
topology: tpu7x:2x2x1
jax: 0.10.0
libtpu: 0.0.40
codegen_flags: <defaults>
</compile_context>

<pallas_src>
import functools

import jax
import jax.numpy as jnp
import numpy as np
from jax.experimental import pallas as pl
from jax.experimental.pallas import tpu as pltpu


def gcn_tile_kernel(a_ref, x_ref, w1_ref, b1_ref, w2_ref, b2_ref, out_ref,
                    *, graphs_per_tile, nodes_per_graph):
    """One grid step == one tile of TG graphs (block-diagonal A fused into one tile).

    a_ref  : (1, NT, NT) bf16   block-diagonal normalized adjacency, NT = TG*n_pg
    x_ref  : (NT, Fin)   bf16   node features of the TG graphs (contiguous rows)
    w1_ref : (Fin, H) bf16      b1_ref : (1, H) f32
    w2_ref : (H, C)   bf16      b2_ref : (1, C) f32
    out_ref: (TG, C)  f32       pooled logits rows for the TG graphs
    """
    A = a_ref[0]                 # (NT, NT) bf16
    X = x_ref[...]               # (NT, Fin) bf16

    # ---- GraphConv 1:  h1 = relu( A @ (X @ W1) + b1 )
    # X@W1 stacked over all TG graphs -> MXU matmul with M = NT.
    xw1 = jnp.dot(X, w1_ref[...], preferred_element_type=jnp.float32)        # (NT, H) f32
    h1 = jnp.dot(A, xw1.astype(jnp.bfloat16),
                 preferred_element_type=jnp.float32) + b1_ref[...]           # (NT, H) f32
    h1 = jnp.maximum(h1, 0.0)                                                # f32 VPU

    # ---- GraphConv 2:  h2 = A @ (h1 @ W2) + b2
    hw2 = jnp.dot(h1.astype(jnp.bfloat16), w2_ref[...],
                  preferred_element_type=jnp.float32)                        # (NT, C) f32
    h2 = jnp.dot(A, hw2.astype(jnp.bfloat16),
                 preferred_element_type=jnp.float32) + b2_ref[...]           # (NT, C) f32

    # ---- dgl.max_nodes per graph + final ReLU, TG pooled rows stored at once.
    h2g = h2.reshape(graphs_per_tile, nodes_per_graph, h2.shape[-1])         # (TG, n_pg, C)
    pooled = jnp.max(h2g, axis=1)                                            # (TG, C)
    out_ref[...] = jnp.maximum(pooled, 0.0)


def gcn_forward(a_tiles, x, w1, b1, w2, b2, *, nodes_per_graph):
    """a_tiles: (T, NT, NT) block-diagonal normalized adjacency tiles
                 (NT = graphs_per_tile * nodes_per_graph).
       x:       (T*NT, Fin) node features, graphs stored contiguously."""
    T, NT, _ = a_tiles.shape
    n_pg = nodes_per_graph
    TG = NT // n_pg
    G = T * TG
    Fin = x.shape[1]
    H = w1.shape[1]
    C = w2.shape[1]

    # bf16 MXU operands live in HBM (halves A/X DMA bytes and VMEM buffers).
    a_bf = a_tiles.astype(jnp.bfloat16)
    x_bf = x.astype(jnp.bfloat16)
    w1_bf = w1.astype(jnp.bfloat16)
    w2_bf = w2.astype(jnp.bfloat16)

    kernel = functools.partial(gcn_tile_kernel,
                               graphs_per_tile=TG, nodes_per_graph=n_pg)

    out = pl.pallas_call(
        kernel,
        out_shape=jax.ShapeDtypeStruct((G, C), jnp.float32),
        grid=(T,),
        in_specs=[
            pl.BlockSpec((1, NT, NT), lambda t: (t, 0, 0)),   # A tile of step t
            pl.BlockSpec((NT, Fin),   lambda t: (t, 0)),      # node rows of step t
            pl.BlockSpec((Fin, H),    lambda t: (0, 0)),      # W1 (resident)
            pl.BlockSpec((1, H),      lambda t: (0, 0)),      # b1
            pl.BlockSpec((H, C),      lambda t: (0, 0)),      # W2
            pl.BlockSpec((1, C),      lambda t: (0, 0)),      # b2
        ],
        out_specs=pl.BlockSpec((TG, C), lambda t: (t, 0)),    # TG pooled rows / step
        compiler_params=pltpu.CompilerParams(
            dimension_semantics=("parallel",)),               # megacore on v7x
    )(a_bf, x_bf, w1_bf, b1, w2_bf, b2)
    return out


def build_graph_blocks(num_graphs, nodes_per_graph):
    """Deterministic per-graph normalized adjacency blocks: ring + self-loops
    (+ one per-graph chord so blocks differ), symmetric, D^{-1/2} A D^{-1/2}."""
    blocks = np.zeros((num_graphs, nodes_per_graph, nodes_per_graph), dtype=np.float32)
    for g in range(num_graphs):
        A = np.eye(nodes_per_graph, dtype=np.float32)            # self loops
        for i in range(nodes_per_graph):                         # ring edges
            j = (i + 1) % nodes_per_graph
            A[i, j] = 1.0
            A[j, i] = 1.0
        c = (g + 2) % nodes_per_graph                            # per-graph chord
        A[0, c] = 1.0
        A[c, 0] = 1.0
        deg = A.sum(axis=1)
        dinv = 1.0 / np.sqrt(deg)
        blocks[g] = A * dinv[:, None] * dinv[None, :]
    return blocks                                                # (G, n_pg, n_pg) np.f32


def assemble_blockdiag_tiles(blocks, graphs_per_tile):
    """Pack TG consecutive per-graph blocks onto the diagonal of one fused tile."""
    G, n_pg, _ = blocks.shape
    assert G % graphs_per_tile == 0
    T = G // graphs_per_tile
    NT = graphs_per_tile * n_pg
    tiles = np.zeros((T, NT, NT), dtype=np.float32)
    for g in range(G):
        t = g // graphs_per_tile
        off = (g % graphs_per_tile) * n_pg
        tiles[t, off:off + n_pg, off:off + n_pg] = blocks[g]
    return jnp.asarray(tiles)                                    # (T, NT, NT)


if __name__ == "__main__":
    num_graphs = 32
    nodes_per_graph = 8
    graphs_per_tile = 16                     # TG*n_pg = 128: fills v5e MXU, half a v6e/v7x pass
    N = num_graphs * nodes_per_graph         # 256 nodes total
    in_feats, h_feats, num_classes = 8, 16, 4

    key = jax.random.PRNGKey(0)
    k_x, k_w1, k_b1, k_w2, k_b2 = jax.random.split(key, 5)

    x = jax.random.normal(k_x, (N, in_feats), dtype=jnp.float32)
    w1 = jax.random.normal(k_w1, (in_feats, h_feats), dtype=jnp.float32) * 0.2
    b1 = jax.random.normal(k_b1, (1, h_feats), dtype=jnp.float32) * 0.1
    w2 = jax.random.normal(k_w2, (h_feats, num_classes), dtype=jnp.float32) * 0.2
    b2 = jax.random.normal(k_b2, (1, num_classes), dtype=jnp.float32) * 0.1

    blocks_np = build_graph_blocks(num_graphs, nodes_per_graph)
    a_tiles = assemble_blockdiag_tiles(blocks_np, graphs_per_tile)

    out = gcn_forward(a_tiles, x, w1, b1, w2, b2, nodes_per_graph=nodes_per_graph)
    out = jax.block_until_ready(out)

    # Reference in plain f32 JAX, per graph (same math; kernel feeds bf16 MXU
    # operands with f32 accumulation, so compare with a modest tolerance).
    refs = []
    for g in range(num_graphs):
        Ag = jnp.asarray(blocks_np[g])
        Xg = x[g * nodes_per_graph:(g + 1) * nodes_per_graph]
        h1 = jnp.maximum(Ag @ (Xg @ w1) + b1, 0.0)
        h2 = Ag @ (h1 @ w2) + b2
        refs.append(jnp.maximum(jnp.max(h2, axis=0), 0.0))
    ref = jnp.stack(refs, axis=0)

    assert out.shape == (num_graphs, num_classes), out.shape
    assert jnp.allclose(out, ref, atol=7e-2, rtol=7e-2), (out, ref)

    print("KERNEL_OK")
</pallas_src>

<mosaic_0001>
module attributes {stable_mosaic.version = 11 : i64} {
  func.func @gcn_tile_kernel(%arg0: i32, %arg1: memref<1x128x128xbf16, #tpu.memory_space<vmem>>, %arg2: memref<128x8xbf16, #tpu.memory_space<vmem>>, %arg3: memref<8x16xbf16, #tpu.memory_space<vmem>>, %arg4: memref<1x16xf32, #tpu.memory_space<vmem>>, %arg5: memref<16x4xbf16, #tpu.memory_space<vmem>>, %arg6: memref<1x4xf32, #tpu.memory_space<vmem>>, %arg7: memref<16x4xf32, #tpu.memory_space<vmem>>) attributes {dimension_semantics = [#tpu.dimension_semantics<parallel>], iteration_bounds = array<i64: 2>, scalar_prefetch = 0 : i64, scratch_operands = 0 : i64, tpu.core_type = #tpu.core_type<tc>, window_params = [{transform_indices = @transform_0, window_bounds = array<i64: 1, 128, 128>}, {transform_indices = @transform_1, window_bounds = array<i64: 128, 8>}, {pipeline_mode = #tpu.pipeline_mode<synchronous>, transform_indices = @transform_2, window_bounds = array<i64: 8, 16>}, {pipeline_mode = #tpu.pipeline_mode<synchronous>, transform_indices = @transform_3, window_bounds = array<i64: 1, 16>}, {pipeline_mode = #tpu.pipeline_mode<synchronous>, transform_indices = @transform_4, window_bounds = array<i64: 16, 4>}, {pipeline_mode = #tpu.pipeline_mode<synchronous>, transform_indices = @transform_5, window_bounds = array<i64: 1, 4>}, {transform_indices = @transform_6, window_bounds = array<i64: 16, 4>}]} {
    %c0 = arith.constant 0 : index
    %c0_0 = arith.constant 0 : index
    %c0_1 = arith.constant 0 : index
    %0 = vector.load %arg1[%c0, %c0_0, %c0_1] : memref<1x128x128xbf16, #tpu.memory_space<vmem>>, vector<1x128x128xbf16>
    %1 = vector.shape_cast %0 : vector<1x128x128xbf16> to vector<128x128xbf16>
    %c0_2 = arith.constant 0 : index
    %c0_3 = arith.constant 0 : index
    %2 = vector.load %arg2[%c0_2, %c0_3] : memref<128x8xbf16, #tpu.memory_space<vmem>>, vector<128x8xbf16>
    %c0_4 = arith.constant 0 : index
    %c0_5 = arith.constant 0 : index
    %3 = vector.load %arg3[%c0_4, %c0_5] : memref<8x16xbf16, #tpu.memory_space<vmem>>, vector<8x16xbf16>
    %cst = arith.constant dense<0.000000e+00> : vector<128x16xf32>
    %4 = tpu.matmul %2, %3, %cst {dimension_numbers = #tpu.dot_dimension_numbers<[1], [0], [0], [1], [0, 0, 1, 1], [], []>} : vector<128x8xbf16>, vector<8x16xbf16>, vector<128x16xf32> -> vector<128x16xf32>
    %5 = arith.truncf %4 : vector<128x16xf32> to vector<128x16xbf16>
    %cst_6 = arith.constant dense<0.000000e+00> : vector<128x16xf32>
    %6 = tpu.matmul %1, %5, %cst_6 {dimension_numbers = #tpu.dot_dimension_numbers<[1], [0], [0], [1], [0, 0, 1, 1], [], []>} : vector<128x128xbf16>, vector<128x16xbf16>, vector<128x16xf32> -> vector<128x16xf32>
    %c0_7 = arith.constant 0 : index
    %c0_8 = arith.constant 0 : index
    %7 = vector.load %arg4[%c0_7, %c0_8] : memref<1x16xf32, #tpu.memory_space<vmem>>, vector<1x16xf32>
    %8 = vector.broadcast %7 : vector<1x16xf32> to vector<128x16xf32>
    %9 = arith.addf %6, %8 : vector<128x16xf32>
    %cst_9 = arith.constant 0.000000e+00 : f32
    %10 = vector.broadcast %cst_9 : f32 to vector<128x16xf32>
    %11 = arith.maximumf %9, %10 : vector<128x16xf32>
    %12 = arith.truncf %11 : vector<128x16xf32> to vector<128x16xbf16>
    %c0_10 = arith.constant 0 : index
    %c0_11 = arith.constant 0 : index
    %13 = vector.load %arg5[%c0_10, %c0_11] : memref<16x4xbf16, #tpu.memory_space<vmem>>, vector<16x4xbf16>
    %cst_12 = arith.constant dense<0.000000e+00> : vector<128x4xf32>
    %14 = tpu.matmul %12, %13, %cst_12 {dimension_numbers = #tpu.dot_dimension_numbers<[1], [0], [0], [1], [0, 0, 1, 1], [], []>} : vector<128x16xbf16>, vector<16x4xbf16>, vector<128x4xf32> -> vector<128x4xf32>
    %15 = arith.truncf %14 : vector<128x4xf32> to vector<128x4xbf16>
    %cst_13 = arith.constant dense<0.000000e+00> : vector<128x4xf32>
    %16 = tpu.matmul %1, %15, %cst_13 {dimension_numbers = #tpu.dot_dimension_numbers<[1], [0], [0], [1], [0, 0, 1, 1], [], []>} : vector<128x128xbf16>, vector<128x4xbf16>, vector<128x4xf32> -> vector<128x4xf32>
    %c0_14 = arith.constant 0 : index
    %c0_15 = arith.constant 0 : index
    %17 = vector.load %arg6[%c0_14, %c0_15] : memref<1x4xf32, #tpu.memory_space<vmem>>, vector<1x4xf32>
    %18 = vector.broadcast %17 : vector<1x4xf32> to vector<128x4xf32>
    %19 = arith.addf %16, %18 : vector<128x4xf32>
    %20 = vector.shape_cast %19 : vector<128x4xf32> to vector<16x8x4xf32>
    %cst_16 = arith.constant dense<0xFF800000> : vector<16x4xf32>
    %21 = vector.multi_reduction <maximumf>, %20, %cst_16 [1] : vector<16x8x4xf32> to vector<16x4xf32>
    %cst_17 = arith.constant 0.000000e+00 : f32
    %22 = vector.broadcast %cst_17 : f32 to vector<16x4xf32>
    %23 = arith.maximumf %21, %22 : vector<16x4xf32>
    %c0_18 = arith.constant 0 : index
    %c0_19 = arith.constant 0 : index
    %24 = vector.load %arg7[%c0_18, %c0_19] : memref<16x4xf32, #tpu.memory_space<vmem>>, vector<16x4xf32>
    tpu.vector_store %arg7[%c0_18, %c0_19], %23 {strides = array<i32>} : memref<16x4xf32, #tpu.memory_space<vmem>>, vector<16x4xf32>,
    return
  }
  func.func @transform_0(%arg0: i32) -> (i32, i32, i32) {
    %c0_i32 = arith.constant 0 : i32
    %c0_i32_0 = arith.constant 0 : i32
    %c0_i32_1 = arith.constant 0 : i32
    return %arg0, %c0_i32, %c0_i32_0 : i32, i32, i32
  }
  func.func @transform_1(%arg0: i32) -> (i32, i32) {
    %c0_i32 = arith.constant 0 : i32
    %c0_i32_0 = arith.constant 0 : i32
    return %arg0, %c0_i32 : i32, i32
  }
  func.func @transform_2(%arg0: i32) -> (i32, i32) {
    %c0_i32 = arith.constant 0 : i32
    %c0_i32_0 = arith.constant 0 : i32
    %c0_i32_1 = arith.constant 0 : i32
    return %c0_i32, %c0_i32_0 : i32, i32
  }
  func.func @transform_3(%arg0: i32) -> (i32, i32) {
    %c0_i32 = arith.constant 0 : i32
    %c0_i32_0 = arith.constant 0 : i32
    %c0_i32_1 = arith.constant 0 : i32
    return %c0_i32, %c0_i32_0 : i32, i32
  }
  func.func @transform_4(%arg0: i32) -> (i32, i32) {
    %c0_i32 = arith.constant 0 : i32
    %c0_i32_0 = arith.constant 0 : i32
    %c0_i32_1 = arith.constant 0 : i32
    return %c0_i32, %c0_i32_0 : i32, i32
  }
  func.func @transform_5(%arg0: i32) -> (i32, i32) {
    %c0_i32 = arith.constant 0 : i32
    %c0_i32_0 = arith.constant 0 : i32
    %c0_i32_1 = arith.constant 0 : i32
    return %c0_i32, %c0_i32_0 : i32, i32
  }
  func.func @transform_6(%arg0: i32) -> (i32, i32) {
    %c0_i32 = arith.constant 0 : i32
    %c0_i32_0 = arith.constant 0 : i32
    return %arg0, %c0_i32 : i32, i32
  }
}

</mosaic_0001>

<llo_original>
// kernel: tpu_custom_call.1
$region0: #{tpu_custom_call.1}
  #allocation0 [shape = 'u32[]', space=smem, size = 0x4, offset = 0x4, fixed_abs, tag = 'smem constant byte address 0x4 - core index']
  #allocation1 [shape = 'u32[144,128]{1,0:T(1,128)}', space=vmem, size = 0x12000, scoped, tag = 'internal scratch']
  %s0 = inlined_call_operand.vmem [shape: bf16[2,128,128], index: 0, kind: input, shape index: {}]
  %s1 = inlined_call_operand.vmem [shape: bf16[256,8], index: 1, kind: input, shape index: {}]
  %s2 = inlined_call_operand.vmem [shape: bf16[8,16], index: 2, kind: input, shape index: {}]
  %s3 = inlined_call_operand.vmem [shape: f32[1,16], index: 3, kind: input, shape index: {}]
  %s4 = inlined_call_operand.vmem [shape: bf16[16,4], index: 4, kind: input, shape index: {}]
  %s5 = inlined_call_operand.vmem [shape: f32[1,4], index: 5, kind: input, shape index: {}]
  %s6 = inlined_call_operand.vmem [shape: f32[32,4], index: 6, kind: output, shape index: {}]
  %s7 = sld [smem:[#allocation0]]
  $region57: #{tpu_custom_call.1} parent=0
    _
  %s9 = ssub.s32 1, %s7
  %s10 = scalar_select 0, %s9, %s7
  loop: start=0, step=1, limit=4
  $region2: #{tpu_custom_call.1} parent=0 // loop_pre_header
    _
  $region3: #{tpu_custom_call.1} parent=0 // loop_header
    %s12 = sphi 0, %s16
    %p13 = scmp.ge.s32.totalorder %s12, 4
    %s22 = sphi 0, %s24
    %s25 = sphi 0, %s22
    %s26 = sphi 0, %s25
    %s42 = sphi 0, %s26
    %s48 = sphi 0, %s50
    %s51 = sphi 0, %s48
    %s52 = sphi 0, %s51
    %s68 = sphi 0, %s52
    %s72 = sphi 0, %s72
    %s74 = sphi 0, %s72
    %s75 = sphi 0, %s74
    %s89 = sphi 0, %s75
    %s93 = sphi 0, %s93
    %s95 = sphi 0, %s93
    %s96 = sphi 0, %s95
    %s110 = sphi 0, %s96
    %s114 = sphi 0, %s114
    %s116 = sphi 0, %s114
    %s117 = sphi 0, %s116
    %s131 = sphi 0, %s117
    %s135 = sphi 0, %s135
    %s137 = sphi 0, %s135
    %s138 = sphi 0, %s137
    %s152 = sphi 0, %s138
    %s158 = sphi 0, %s160
    %s161 = sphi 0, %s158
    %s162 = sphi 0, %s161
    %s178 = sphi 0, %s162
  $region4: #{tpu_custom_call.1} parent=0 // loop_header_branch
    %15 = sbr.rel (%p13) target = $region8
  $region5: #{tpu_custom_call.1} parent=0 // loop_body
    %s17 = ssub.s32 %s12, 1
    %s18 = ssub.s32 %s12, 2
    %s19 = sadd.s32 %s12, 1
    %s20 = ssub.s32 %s12, %s19
    %p21 = scmp.eq.s32.totalorder %s20, 0
    %s23 = sadd.s32 %s22, 1
    %s24 = scalar_select %p21, %s22, %s23
    %p27 = pneg %p21
    %p28 = scmp.eq.s32.totalorder %s12, 1
    %p29 = por %p27, %p28
    %p30 = scmp.ne.s32.totalorder %s22, %s25
    %p31 = scmp.eq.s32.totalorder %s12, 0
    %p32 = por %p30, %p31
    %p33 = scmp.ne.s32.totalorder %s22, %s25
    %p34 = scmp.eq.s32.totalorder %s17, 1
    %p35 = por %p33, %p34
    %p36 = scmp.ne.s32.totalorder %s25, %s26
    %p37 = scmp.eq.s32.totalorder %s17, 0
    %p38 = por %p36, %p37
    %p39 = scmp.ne.s32.totalorder %s25, %s26
    %p40 = scmp.eq.s32.totalorder %s18, 1
    %p41 = por %p39, %p40
    %p43 = scmp.ne.s32.totalorder %s26, %s42
    %p44 = scmp.eq.s32.totalorder %s18, 0
    %p45 = por %p43, %p44
    %s46 = ssub.s32 %s12, %s19
    %p47 = scmp.eq.s32.totalorder %s46, 0
    %s49 = sadd.s32 %s48, 1
    %s50 = scalar_select %p47, %s48, %s49
    %p53 = pneg %p47
    %p54 = scmp.eq.s32.totalorder %s12, 1
    %p55 = por %p53, %p54
    %p56 = scmp.ne.s32.totalorder %s48, %s51
    %p57 = scmp.eq.s32.totalorder %s12, 0
    %p58 = por %p56, %p57
    %p59 = scmp.ne.s32.totalorder %s48, %s51
    %p60 = scmp.eq.s32.totalorder %s17, 1
    %p61 = por %p59, %p60
    %p62 = scmp.ne.s32.totalorder %s51, %s52
    %p63 = scmp.eq.s32.totalorder %s17, 0
    %p64 = por %p62, %p63
    %p65 = scmp.ne.s32.totalorder %s51, %s52
    %p66 = scmp.eq.s32.totalorder %s18, 1
    %p67 = por %p65, %p66
    %p69 = scmp.ne.s32.totalorder %s52, %s68
    %p70 = scmp.eq.s32.totalorder %s18, 0
    %p71 = por %p69, %p70
    %s73 = sadd.s32 %s72, 1
    %p76 = scmp.eq.s32.totalorder %s12, 1
    %p77 = scmp.ne.s32.totalorder %s72, %s74
    %p78 = scmp.eq.s32.totalorder %s12, 0
    %p79 = por %p77, %p78
    %p80 = scmp.ne.s32.totalorder %s72, %s74
    %p81 = scmp.eq.s32.totalorder %s17, 1
    %p82 = por %p80, %p81
    %p83 = scmp.ne.s32.totalorder %s74, %s75
    %p84 = scmp.eq.s32.totalorder %s17, 0
    %p85 = por %p83, %p84
    %p86 = scmp.ne.s32.totalorder %s74, %s75
    %p87 = scmp.eq.s32.totalorder %s18, 1
    %p88 = por %p86, %p87
    %p90 = scmp.ne.s32.totalorder %s75, %s89
    %p91 = scmp.eq.s32.totalorder %s18, 0
    %p92 = por %p90, %p91
    %s94 = sadd.s32 %s93, 1
    %p97 = scmp.eq.s32.totalorder %s12, 1
    %p98 = scmp.ne.s32.totalorder %s93, %s95
    %p99 = scmp.eq.s32.totalorder %s12, 0
    %p100 = por %p98, %p99
    %p101 = scmp.ne.s32.totalorder %s93, %s95
    %p102 = scmp.eq.s32.totalorder %s17, 1
    %p103 = por %p101, %p102
    %p104 = scmp.ne.s32.totalorder %s95, %s96
    %p105 = scmp.eq.s32.totalorder %s17, 0
    %p106 = por %p104, %p105
    %p107 = scmp.ne.s32.totalorder %s95, %s96
    %p108 = scmp.eq.s32.totalorder %s18, 1
    %p109 = por %p107, %p108
    %p111 = scmp.ne.s32.totalorder %s96, %s110
    %p112 = scmp.eq.s32.totalorder %s18, 0
    %p113 = por %p111, %p112
    %s115 = sadd.s32 %s114, 1
    %p118 = scmp.eq.s32.totalorder %s12, 1
    %p119 = scmp.ne.s32.totalorder %s114, %s116
    %p120 = scmp.eq.s32.totalorder %s12, 0
    %p121 = por %p119, %p120
    %p122 = scmp.ne.s32.totalorder %s114, %s116
    %p123 = scmp.eq.s32.totalorder %s17, 1
    %p124 = por %p122, %p123
    %p125 = scmp.ne.s32.totalorder %s116, %s117
    %p126 = scmp.eq.s32.totalorder %s17, 0
    %p127 = por %p125, %p126
    %p128 = scmp.ne.s32.totalorder %s116, %s117
    %p129 = scmp.eq.s32.totalorder %s18, 1
    %p130 = por %p128, %p129
    %p132 = scmp.ne.s32.totalorder %s117, %s131
    %p133 = scmp.eq.s32.totalorder %s18, 0
    %p134 = por %p132, %p133
    %s136 = sadd.s32 %s135, 1
    %p139 = scmp.eq.s32.totalorder %s12, 1
    %p140 = scmp.ne.s32.totalorder %s135, %s137
    %p141 = scmp.eq.s32.totalorder %s12, 0
    %p142 = por %p140, %p141
    %p143 = scmp.ne.s32.totalorder %s135, %s137
    %p144 = scmp.eq.s32.totalorder %s17, 1
    %p145 = por %p143, %p144
    %p146 = scmp.ne.s32.totalorder %s137, %s138
    %p147 = scmp.eq.s32.totalorder %s17, 0
    %p148 = por %p146, %p147
    %p149 = scmp.ne.s32.totalorder %s137, %s138
    %p150 = scmp.eq.s32.totalorder %s18, 1
    %p151 = por %p149, %p150
    %p153 = scmp.ne.s32.totalorder %s138, %s152
    %p154 = scmp.eq.s32.totalorder %s18, 0
    %p155 = por %p153, %p154
    %s156 = ssub.s32 %s12, %s19
    %p157 = scmp.eq.s32.totalorder %s156, 0
    %s159 = sadd.s32 %s158, 1
    %s160 = scalar_select %p157, %s158, %s159
    %p163 = pneg %p157
    %p164 = scmp.eq.s32.totalorder %s12, 1
    %p165 = por %p163, %p164
    %p166 = scmp.ne.s32.totalorder %s158, %s161
    %p167 = scmp.eq.s32.totalorder %s12, 0
    %p168 = por %p166, %p167
    %p169 = scmp.ne.s32.totalorder %s158, %s161
    %p170 = scmp.eq.s32.totalorder %s17, 1
    %p171 = por %p169, %p170
    %p172 = scmp.ne.s32.totalorder %s161, %s162
    %p173 = scmp.eq.s32.totalorder %s17, 0
    %p174 = por %p172, %p173
    %p175 = scmp.ne.s32.totalorder %s161, %s162
    %p176 = scmp.eq.s32.totalorder %s18, 1
    %p177 = por %p175, %p176
    %p179 = scmp.ne.s32.totalorder %s162, %s178
    %p180 = scmp.eq.s32.totalorder %s18, 0
    %p181 = por %p179, %p180
    %p182 = scmp.le.s32.totalorder 1, %s12
    %p183 = scmp.lt.s32.totalorder %s12, 3
    %p184 = pnand %p182, %p183
    %p185 = pneg %p184
    // Predicated region
    $region9: #{tpu_custom_call.1} parent=5 // pred_check
      _
    $region10: #{tpu_custom_call.1} parent=5 // pred_check_branch
      %187 = sbr.rel (%p184) target = $region12
    $region11: #{tpu_custom_call.1} parent=5 // pred_region
      %s188 = ssub.s32 %s12, 1
      // Predicated region
      $region13: #{tpu_custom_call.1} parent=11 // pred_check
        %p189 = pneg %p85
      $region14: #{tpu_custom_call.1} parent=11 // pred_check_branch
        %191 = sbr.rel (%p189) target = $region16
      $region15: #{tpu_custom_call.1} parent=11 // pred_region
        _
      $region16: #{tpu_custom_call.1} parent=11 // pred_fallthru
        _
      // Predicated region
      $region17: #{tpu_custom_call.1} parent=11 // pred_check
        %p192 = pneg %p106
      $region18: #{tpu_custom_call.1} parent=11 // pred_check_branch
        %194 = sbr.rel (%p192) target = $region20
      $region19: #{tpu_custom_call.1} parent=11 // pred_region
        _
      $region20: #{tpu_custom_call.1} parent=11 // pred_fallthru
        _
      // Predicated region
      $region21: #{tpu_custom_call.1} parent=11 // pred_check
        %p195 = pneg %p127
      $region22: #{tpu_custom_call.1} parent=11 // pred_check_branch
        %197 = sbr.rel (%p195) target = $region24
      $region23: #{tpu_custom_call.1} parent=11 // pred_region
        _
      $region24: #{tpu_custom_call.1} parent=11 // pred_fallthru
        _
      // Predicated region
      $region25: #{tpu_custom_call.1} parent=11 // pred_check
        %p198 = pneg %p148
      $region26: #{tpu_custom_call.1} parent=11 // pred_check_branch
        %200 = sbr.rel (%p198) target = $region28
      $region27: #{tpu_custom_call.1} parent=11 // pred_region
        _
      $region28: #{tpu_custom_call.1} parent=11 // pred_fallthru
        _
    $region12: #{tpu_custom_call.1} parent=5 // pred_fallthru
      _
    %p201 = scmp.lt.s32.totalorder %s12, 2
    // Predicated region
    $region29: #{tpu_custom_call.1} parent=5 // pred_check
      %p202 = pneg %p201
    $region30: #{tpu_custom_call.1} parent=5 // pred_check_branch
      %204 = sbr.rel (%p202) target = $region32
    $region31: #{tpu_custom_call.1} parent=5 // pred_region
      // Predicated region
      $region33: #{tpu_custom_call.1} parent=31 // pred_check
        %p205 = pneg %p32
      $region34: #{tpu_custom_call.1} parent=31 // pred_check_branch
        %207 = sbr.rel (%p205) target = $region36
      $region35: #{tpu_custom_call.1} parent=31 // pred_region
        %p208 = scmp.lt.s32.totalorder %s12, 1
        %s209 = scalar_select %p208, %s12, 1
        %s210 = smul.addr %s209, 16
        %s211 = smul.addr %s210, 4
        %s212 = scalar_lea.vmem %s0, %s211
      $region36: #{tpu_custom_call.1} parent=31 // pred_fallthru
        _
      // Predicated region
      $region37: #{tpu_custom_call.1} parent=31 // pred_check
        %p213 = pneg %p58
      $region38: #{tpu_custom_call.1} parent=31 // pred_check_branch
        %215 = sbr.rel (%p213) target = $region40
      $region39: #{tpu_custom_call.1} parent=31 // pred_region
        %s216 = smul.u32 16, %s12
        %p217 = scmp.lt.s32.totalorder %s216, 31
        %s218 = scalar_select %p217, %s216, 31
        %s219 = smul.addr %s218, 4
        %s220 = scalar_lea.vmem %s1, %s219
        %s221 = smul.u32 16, %s12
      $region40: #{tpu_custom_call.1} parent=31 // pred_fallthru
        _
    $region32: #{tpu_custom_call.1} parent=5 // pred_fallthru
      _
    %p222 = scmp.le.s32.totalorder 1, %s12
    %p223 = scmp.lt.s32.totalorder %s12, 3
    %p224 = pnand %p222, %p223
    %p225 = pneg %p224
    // Predicated region
    $region41: #{tpu_custom_call.1} parent=5 // pred_check
      _
    $region42: #{tpu_custom_call.1} parent=5 // pred_check_branch
      %227 = sbr.rel (%p224) target = $region44
    $region43: #{tpu_custom_call.1} parent=5 // pred_region
      %s228 = ssub.s32 %s12, 1
      %p229 = scmp.lt.s32.totalorder %s17, 1
      %s230 = scalar_select %p229, %s17, 1
      %s231 = smul.addr %s230, 16
      %s232 = smul.addr %s231, 4
      %s233 = scalar_lea.vmem %s0, %s232
      %p234 = pneg %p38
      %p235 = pneg %p35
      %s236 = smul.u32 16, %s17
      %p237 = scmp.lt.s32.totalorder %s236, 31
      %s238 = scalar_select %p237, %s236, 31
      %s239 = smul.addr %s238, 4
      %s240 = scalar_lea.vmem %s1, %s239
      %p241 = pneg %p64
      %p242 = pneg %p61
      %p243 = pneg %p85
      %p244 = pneg %p82
      %p245 = pneg %p106
      %p246 = pneg %p103
      %p247 = pneg %p127
      %p248 = pneg %p124
      %p249 = pneg %p148
      %p250 = pneg %p145
      %p251 = pneg %p174
      %p252 = pneg %p171
      %s253 = smul.u32 2, %s17
      %p254 = scmp.lt.s32.totalorder %s253, 3
      %s255 = scalar_select %p254, %s253, 3
      %s256 = smul.addr %s255, 8
      %s257 = scalar_lea.vmem %s6, %s256
      %p258 = scmp.lt.s32.totalorder %s17, 1
      %s259 = scalar_select %p258, %s17, 1
      %s260 = smul.addr %s259, 16
      %s261 = smul.addr %s260, 4
      %s262 = scalar_lea.vmem %s0, %s261
      %s263 = smul.u32 16, %s17
      %p264 = scmp.lt.s32.totalorder %s263, 31
      %s265 = scalar_select %p264, %s263, 31
      %s266 = smul.addr %s265, 4
      %s267 = scalar_lea.vmem %s1, %s266
      %s268 = smul.u32 16, %s17
      %s269 = smul.u32 2, %s17
      %p270 = scmp.lt.s32.totalorder %s269, 3
      %s271 = scalar_select %p270, %s269, 3
      %s272 = smul.addr %s271, 8
      %s273 = scalar_lea.vmem %s6, %s272
      %s274 = smul.u32 2, %s17
      %v276 = vld [vmem:[%s262] sm:$0xf]
      %v277 = vld [vmem:[%s262 + $0x4] sm:$0xf]
      %v278 = vld [vmem:[%s262 + $0x8] sm:$0xf]
      %v279 = vld [vmem:[%s262 + $0xc] sm:$0xf]
      %v280 = vld [vmem:[%s262 + $0x10] sm:$0xf]
      %v281 = vld [vmem:[%s262 + $0x14] sm:$0xf]
      %v282 = vld [vmem:[%s262 + $0x18] sm:$0xf]
      %v283 = vld [vmem:[%s262 + $0x1c] sm:$0xf]
      %v284 = vld [vmem:[%s262 + $0x20] sm:$0xf]
      %v285 = vld [vmem:[%s262 + $0x24] sm:$0xf]
      %v286 = vld [vmem:[%s262 + $0x28] sm:$0xf]
      %v287 = vld [vmem:[%s262 + $0x2c] sm:$0xf]
      %v288 = vld [vmem:[%s262 + $0x30] sm:$0xf]
      %v289 = vld [vmem:[%s262 + $0x34] sm:$0xf]
      %v290 = vld [vmem:[%s262 + $0x38] sm:$0xf]
      %v291 = vld [vmem:[%s262 + $0x3c] sm:$0xf]
      %v292 = vld [vmem:[%s267] sm:$0xf]
      %v293 = vld [vmem:[%s267 + $0x4] sm:$0xf]
      %v294 = vld [vmem:[%s267 + $0x8] sm:$0xf]
      %v295 = vld [vmem:[%s267 + $0xc] sm:$0xf]
      %v296 = vld [vmem:[%s267 + $0x10] sm:$0xf]
      %v297 = vld [vmem:[%s267 + $0x14] sm:$0xf]
      %v298 = vld [vmem:[%s267 + $0x18] sm:$0xf]
      %v299 = vld [vmem:[%s267 + $0x1c] sm:$0xf]
      %v300 = vld [vmem:[%s267 + $0x20] sm:$0xf]
      %v301 = vld [vmem:[%s267 + $0x24] sm:$0xf]
      %v302 = vld [vmem:[%s267 + $0x28] sm:$0xf]
      %v303 = vld [vmem:[%s267 + $0x2c] sm:$0xf]
      %v304 = vld [vmem:[%s267 + $0x30] sm:$0xf]
      %v305 = vld [vmem:[%s267 + $0x34] sm:$0xf]
      %v306 = vld [vmem:[%s267 + $0x38] sm:$0xf]
      %v307 = vld [vmem:[%s267 + $0x3c] sm:$0xf]
      %v308 = vld [vmem:[%s2] sm:$0xf]
      %v325 = vunpack.c.l.b16 %v292
      %v326 = vunpack.c.l.b16 %v293
      %v327 = vunpack.c.l.b16 %v294
      %v328 = vunpack.c.l.b16 %v295
      %v329 = vunpack.c.l.b16 %v296
      %v330 = vunpack.c.l.b16 %v297
      %v331 = vunpack.c.l.b16 %v298
      %v332 = vunpack.c.l.b16 %v299
      %v333 = vunpack.c.l.b16 %v300
      %v334 = vunpack.c.l.b16 %v301
      %v335 = vunpack.c.l.b16 %v302
      %v336 = vunpack.c.l.b16 %v303
      %v337 = vunpack.c.l.b16 %v304
      %v338 = vunpack.c.l.b16 %v305
      %v339 = vunpack.c.l.b16 %v306
      %v340 = vunpack.c.l.b16 %v307
      %v341 = vpack.c.b16 %v326, %v325
      %v342 = vpack.c.b16 %v328, %v327
      %v343 = vpack.c.b16 %v330, %v329
      %v344 = vpack.c.b16 %v332, %v331
      %v345 = vpack.c.b16 %v334, %v333
      %v346 = vpack.c.b16 %v336, %v335
      %v347 = vpack.c.b16 %v338, %v337
      %v348 = vpack.c.b16 %v340, %v339
      %vm349 = vcmask 64512
      %v351 = vsel %vm349, %v341, 0
      %v354 = vsel %vm349, %v342, 0
      %v357 = vsel %vm349, %v343, 0
      %v360 = vsel %vm349, %v344, 0
      %v363 = vsel %vm349, %v345, 0
      %v366 = vsel %vm349, %v346, 0
      %v369 = vsel %vm349, %v347, 0
      %v372 = vsel %vm349, %v348, 0
      %vm374 = vcmask 1043456
      %v376 = vsel %vm374, %v308, 0
      %378 = vmatprep.subr.bf16.mxu0 0
      %379 = vmatpush1.bf16.msra.mxu0 %v376
      %380 = vmatprep.subr.bf16.mxu0 0
      %381 = vmatpush1.bf16.msra.mxu0 0
      %382 = vmatprep.subr.bf16.mxu0 0
      %383 = vmatpush1.bf16.msra.mxu0 0
      %384 = vmatprep.subr.bf16.mxu0 0
      %385 = vmatpush1.bf16.msra.mxu0 0
      %386 = vmatprep.subr.bf16.mxu0 0
      %387 = vmatpush1.bf16.msra.mxu0 0
      %388 = vmatprep.subr.bf16.mxu0 0
      %389 = vmatpush1.bf16.msra.mxu0 0
      %390 = vmatprep.subr.bf16.mxu0 0
      %391 = vmatpush1.bf16.msra.mxu0 0
      %392 = vmatprep.subr.bf16.mxu0 0
      %393 = vmatpush1.bf16.msra.mxu0 0
      %394 = vmatprep.subr.bf16.mxu0 0
      %395 = vmatpush1.bf16.msra.mxu0 0
      %396 = vmatprep.subr.bf16.mxu0 0
      %397 = vmatpush1.bf16.msra.mxu0 0
      %398 = vmatprep.subr.bf16.mxu0 0
      %399 = vmatpush1.bf16.msra.mxu0 0
      %400 = vmatprep.subr.bf16.mxu0 0
      %401 = vmatpush1.bf16.msra.mxu0 0
      %402 = vmatprep.subr.bf16.mxu0 0
      %403 = vmatpush1.bf16.msra.mxu0 0
      %404 = vmatprep.subr.bf16.mxu0 0
      %405 = vmatpush1.bf16.msra.mxu0 0
      %406 = vmatprep.subr.bf16.mxu0 0
      %407 = vmatpush1.bf16.msra.mxu0 0
      %408 = vmatprep.subr.bf16.mxu0 0
      %409 = vmatpush1.bf16.msra.mxu0 0
      %410 = vmatprep.mubr.bf16.mxu0 0
      %411 = vmatmul.mubr.bf16.gmra.mrb[0].mxu0 %v351
      %v412 = vpop.f32.mrb[0].mxu0
      %v413 = vadd.f32 0.0, %v412
      %v414 = vpop.f32.mrb[0].mxu0
      %v415 = vpop.f32.mrb[0].mxu0
      %v416 = vadd.f32 0.0, %v415
      %v417 = vpop.f32.mrb[0].mxu0
      %418 = vmatprep.mubr.bf16.mxu0 0
      %419 = vmatmul.mubr.bf16.gmra.mrb[0].mxu0 %v354
      %v420 = vpop.f32.mrb[0].mxu0
      %v421 = vadd.f32 0.0, %v420
      %v422 = vpop.f32.mrb[0].mxu0
      %v423 = vpop.f32.mrb[0].mxu0
      %v424 = vadd.f32 0.0, %v423
      %v425 = vpop.f32.mrb[0].mxu0
      %426 = vmatprep.mubr.bf16.mxu0 0
      %427 = vmatmul.mubr.bf16.gmra.mrb[0].mxu0 %v357
      %v428 = vpop.f32.mrb[0].mxu0
      %v429 = vadd.f32 0.0, %v428
      %v430 = vpop.f32.mrb[0].mxu0
      %v431 = vpop.f32.mrb[0].mxu0
      %v432 = vadd.f32 0.0, %v431
      %v433 = vpop.f32.mrb[0].mxu0
      %434 = vmatprep.mubr.bf16.mxu0 0
      %435 = vmatmul.mubr.bf16.gmra.mrb[0].mxu0 %v360
      %v436 = vpop.f32.mrb[0].mxu0
      %v437 = vadd.f32 0.0, %v436
      %v438 = vpop.f32.mrb[0].mxu0
      %v439 = vpop.f32.mrb[0].mxu0
      %v440 = vadd.f32 0.0, %v439
      %v441 = vpop.f32.mrb[0].mxu0
      %442 = vmatprep.mubr.bf16.mxu0 0
      %443 = vmatmul.mubr.bf16.gmra.mrb[0].mxu0 %v363
      %v444 = vpop.f32.mrb[0].mxu0
      %v445 = vadd.f32 0.0, %v444
      %v446 = vpop.f32.mrb[0].mxu0
      %v447 = vpop.f32.mrb[0].mxu0
      %v448 = vadd.f32 0.0, %v447
      %v449 = vpop.f32.mrb[0].mxu0
      %450 = vmatprep.mubr.bf16.mxu0 0
      %451 = vmatmul.mubr.bf16.gmra.mrb[0].mxu0 %v366
      %v452 = vpop.f32.mrb[0].mxu0
      %v453 = vadd.f32 0.0, %v452
      %v454 = vpop.f32.mrb[0].mxu0
      %v455 = vpop.f32.mrb[0].mxu0
      %v456 = vadd.f32 0.0, %v455
      %v457 = vpop.f32.mrb[0].mxu0
      %458 = vmatprep.mubr.bf16.mxu0 0
      %459 = vmatmul.mubr.bf16.gmra.mrb[0].mxu0 %v369
      %v460 = vpop.f32.mrb[0].mxu0
      %v461 = vadd.f32 0.0, %v460
      %v462 = vpop.f32.mrb[0].mxu0
      %v463 = vpop.f32.mrb[0].mxu0
      %v464 = vadd.f32 0.0, %v463
      %v465 = vpop.f32.mrb[0].mxu0
      %466 = vmatprep.mubr.bf16.mxu0 0
      %467 = vmatmul.mubr.bf16.gmra.mrb[0].mxu0 %v372
      %v468 = vpop.f32.mrb[0].mxu0
      %v469 = vadd.f32 0.0, %v468
      %v470 = vpop.f32.mrb[0].mxu0
      %v471 = vpop.f32.mrb[0].mxu0
      %v472 = vadd.f32 0.0, %v471
      %v473 = vpop.f32.mrb[0].mxu0
      %474 = vdwg.mxu0
      %v475 = vpack.c.bf16 %v416, %v413
      %v476 = vpack.c.bf16 %v424, %v421
      %v477 = vpack.c.bf16 %v432, %v429
      %v478 = vpack.c.bf16 %v440, %v437
      %v479 = vpack.c.bf16 %v448, %v445
      %v480 = vpack.c.bf16 %v456, %v453
      %v481 = vpack.c.bf16 %v464, %v461
      %v482 = vpack.c.bf16 %v472, %v469
      %v483 = vld [vmem:[%s3] sm:$0x1]
      %v485 = vlaneseq
      %v486 = vshrl.u32 %v485, 7
      %v487 = vsub.s32 0, %v486
      %v488 = vrot.slane %v483, %v487
      %v506 = vunpack.c.l.b16 %v276
      %v507 = vunpack.c.l.b16 %v277
      %v508 = vunpack.c.l.b16 %v278
      %v509 = vunpack.c.l.b16 %v279
      %v510 = vunpack.c.l.b16 %v280
      %v511 = vunpack.c.l.b16 %v281
      %v512 = vunpack.c.l.b16 %v282
      %v513 = vunpack.c.l.b16 %v283
      %v514 = vunpack.c.l.b16 %v284
      %v515 = vunpack.c.l.b16 %v285
      %v516 = vunpack.c.l.b16 %v286
      %v517 = vunpack.c.l.b16 %v287
      %v518 = vunpack.c.l.b16 %v288
      %v519 = vunpack.c.l.b16 %v289
      %v520 = vunpack.c.l.b16 %v290
      %v521 = vunpack.c.l.b16 %v291
      %v522 = vpack.c.b16 %v507, %v506
      %v523 = vpack.c.b16 %v509, %v508
      %v524 = vpack.c.b16 %v511, %v510
      %v525 = vpack.c.b16 %v513, %v512
      %v526 = vpack.c.b16 %v515, %v514
      %v527 = vpack.c.b16 %v517, %v516
      %v528 = vpack.c.b16 %v519, %v518
      %v529 = vpack.c.b16 %v521, %v520
      %538 = vmatprep.subr.bf16.mxu0 0
      %539 = vmatpush1.bf16.msra.mxu0 %v475
      %540 = vmatprep.subr.bf16.mxu0 0
      %541 = vmatpush1.bf16.msra.mxu0 %v476
      %542 = vmatprep.subr.bf16.mxu0 0
      %543 = vmatpush1.bf16.msra.mxu0 %v477
      %544 = vmatprep.subr.bf16.mxu0 0
      %545 = vmatpush1.bf16.msra.mxu0 %v478
      %546 = vmatprep.subr.bf16.mxu0 0
      %547 = vmatpush1.bf16.msra.mxu0 %v479
      %548 = vmatprep.subr.bf16.mxu0 0
      %549 = vmatpush1.bf16.msra.mxu0 %v480
      %550 = vmatprep.subr.bf16.mxu0 0
      %551 = vmatpush1.bf16.msra.mxu0 %v481
      %552 = vmatprep.subr.bf16.mxu0 0
      %553 = vmatpush1.bf16.msra.mxu0 %v482
      %554 = vmatprep.subr.bf16.mxu0 0
      %555 = vmatpush1.bf16.msra.mxu0 0
      %556 = vmatprep.subr.bf16.mxu0 0
      %557 = vmatpush1.bf16.msra.mxu0 0
      %558 = vmatprep.subr.bf16.mxu0 0
      %559 = vmatpush1.bf16.msra.mxu0 0
      %560 = vmatprep.subr.bf16.mxu0 0
      %561 = vmatpush1.bf16.msra.mxu0 0
      %562 = vmatprep.subr.bf16.mxu0 0
      %563 = vmatpush1.bf16.msra.mxu0 0
      %564 = vmatprep.subr.bf16.mxu0 0
      %565 = vmatpush1.bf16.msra.mxu0 0
      %566 = vmatprep.subr.bf16.mxu0 0
      %567 = vmatpush1.bf16.msra.mxu0 0
      %568 = vmatprep.subr.bf16.mxu0 0
      %569 = vmatpush1.bf16.msra.mxu0 0
      %570 = vmatprep.mubr.bf16.mxu0 0
      %571 = vmatmul.mubr.bf16.gmra.mrb[0].mxu0 %v522
      %v572 = vpop.f32.mrb[0].mxu0
      %v573 = vadd.f32 %v488, %v572
      %v574 = vpop.f32.mrb[0].mxu0
      %v575 = vpop.f32.mrb[0].mxu0
      %v576 = vadd.f32 %v488, %v575
      %v577 = vpop.f32.mrb[0].mxu0
      %578 = vmatprep.mubr.bf16.mxu0 0
      %579 = vmatmul.mubr.bf16.gmra.mrb[0].mxu0 %v523
      %v580 = vpop.f32.mrb[0].mxu0
      %v581 = vadd.f32 %v488, %v580
      %v582 = vpop.f32.mrb[0].mxu0
      %v583 = vpop.f32.mrb[0].mxu0
      %v584 = vadd.f32 %v488, %v583
      %v585 = vpop.f32.mrb[0].mxu0
      %586 = vmatprep.mubr.bf16.mxu0 0
      %587 = vmatmul.mubr.bf16.gmra.mrb[0].mxu0 %v524
      %v588 = vpop.f32.mrb[0].mxu0
      %v589 = vadd.f32 %v488, %v588
      %v590 = vpop.f32.mrb[0].mxu0
      %v591 = vpop.f32.mrb[0].mxu0
      %v592 = vadd.f32 %v488, %v591
      %v593 = vpop.f32.mrb[0].mxu0
      %594 = vmatprep.mubr.bf16.mxu0 0
      %595 = vmatmul.mubr.bf16.gmra.mrb[0].mxu0 %v525
      %v596 = vpop.f32.mrb[0].mxu0
      %v597 = vadd.f32 %v488, %v596
      %v598 = vpop.f32.mrb[0].mxu0
      %v599 = vpop.f32.mrb[0].mxu0
      %v600 = vadd.f32 %v488, %v599
      %v601 = vpop.f32.mrb[0].mxu0
      %602 = vmatprep.mubr.bf16.mxu0 0
      %603 = vmatmul.mubr.bf16.gmra.mrb[0].mxu0 %v526
      %v604 = vpop.f32.mrb[0].mxu0
      %v605 = vadd.f32 %v488, %v604
      %v606 = vpop.f32.mrb[0].mxu0
      %v607 = vpop.f32.mrb[0].mxu0
      %v608 = vadd.f32 %v488, %v607
      %v609 = vpop.f32.mrb[0].mxu0
      %610 = vmatprep.mubr.bf16.mxu0 0
      %611 = vmatmul.mubr.bf16.gmra.mrb[0].mxu0 %v527
      %v612 = vpop.f32.mrb[0].mxu0
      %v613 = vadd.f32 %v488, %v612
      %v614 = vpop.f32.mrb[0].mxu0
      %v615 = vpop.f32.mrb[0].mxu0
      %v616 = vadd.f32 %v488, %v615
      %v617 = vpop.f32.mrb[0].mxu0
      %618 = vmatprep.mubr.bf16.mxu0 0
      %619 = vmatmul.mubr.bf16.gmra.mrb[0].mxu0 %v528
      %v620 = vpop.f32.mrb[0].mxu0
      %v621 = vadd.f32 %v488, %v620
      %v622 = vpop.f32.mrb[0].mxu0
      %v623 = vpop.f32.mrb[0].mxu0
      %v624 = vadd.f32 %v488, %v623
      %v625 = vpop.f32.mrb[0].mxu0
      %626 = vmatprep.mubr.bf16.mxu0 0
      %627 = vmatmul.mubr.bf16.gmra.mrb[0].mxu0 %v529
      %v628 = vpop.f32.mrb[0].mxu0
      %v629 = vadd.f32 %v488, %v628
      %v630 = vpop.f32.mrb[0].mxu0
      %v631 = vpop.f32.mrb[0].mxu0
      %v632 = vadd.f32 %v488, %v631
      %v633 = vpop.f32.mrb[0].mxu0
      %634 = vdwg.mxu0
      %v635 = vmax.f32 %v573, 0.0
      %v636 = vmax.f32 %v576, 0.0
      %v637 = vmax.f32 %v581, 0.0
      %v638 = vmax.f32 %v584, 0.0
      %v639 = vmax.f32 %v589, 0.0
      %v640 = vmax.f32 %v592, 0.0
      %v641 = vmax.f32 %v597, 0.0
      %v642 = vmax.f32 %v600, 0.0
      %v643 = vmax.f32 %v605, 0.0
      %v644 = vmax.f32 %v608, 0.0
      %v645 = vmax.f32 %v613, 0.0
      %v646 = vmax.f32 %v616, 0.0
      %v647 = vmax.f32 %v621, 0.0
      %v648 = vmax.f32 %v624, 0.0
      %v649 = vmax.f32 %v629, 0.0
      %v650 = vmax.f32 %v632, 0.0
      %v651 = vpack.c.bf16 %v636, %v635
      %v652 = vpack.c.bf16 %v638, %v637
      %v653 = vpack.c.bf16 %v640, %v639
      %v654 = vpack.c.bf16 %v642, %v641
      %v655 = vpack.c.bf16 %v644, %v643
      %v656 = vpack.c.bf16 %v646, %v645
      %v657 = vpack.c.bf16 %v648, %v647
      %v658 = vpack.c.bf16 %v650, %v649
      %v659 = vld [vmem:[%s4] sm:$0xf]
      %v660 = vld [vmem:[%s4 + $0x4] sm:$0xf]
      %v663 = vunpack.c.l.b16 %v659
      %v664 = vunpack.c.l.b16 %v660
      %v665 = vpack.c.b16 %v664, %v663
      %vm667 = vcmask 130048
      %v669 = vsel %vm667, %v651, 0
      %v672 = vsel %vm667, %v652, 0
      %v675 = vsel %vm667, %v653, 0
      %v678 = vsel %vm667, %v654, 0
      %v681 = vsel %vm667, %v655, 0
      %v684 = vsel %vm667, %v656, 0
      %v687 = vsel %vm667, %v657, 0
      %v690 = vsel %vm667, %v658, 0
      %692 = vmatprep.subr.bf16.mxu0 0
      %693 = vmatpush1.bf16.msra.mxu0 %v665
      %694 = vmatprep.subr.bf16.mxu0 0
      %695 = vmatpush1.bf16.msra.mxu0 0
      %696 = vmatprep.subr.bf16.mxu0 0
      %697 = vmatpush1.bf16.msra.mxu0 0
      %698 = vmatprep.subr.bf16.mxu0 0
      %699 = vmatpush1.bf16.msra.mxu0 0
      %700 = vmatprep.subr.bf16.mxu0 0
      %701 = vmatpush1.bf16.msra.mxu0 0
      %702 = vmatprep.subr.bf16.mxu0 0
      %703 = vmatpush1.bf16.msra.mxu0 0
      %704 = vmatprep.subr.bf16.mxu0 0
      %705 = vmatpush1.bf16.msra.mxu0 0
      %706 = vmatprep.subr.bf16.mxu0 0
      %707 = vmatpush1.bf16.msra.mxu0 0
      %708 = vmatprep.subr.bf16.mxu0 0
      %709 = vmatpush1.bf16.msra.mxu0 0
      %710 = vmatprep.subr.bf16.mxu0 0
      %711 = vmatpush1.bf16.msra.mxu0 0
      %712 = vmatprep.subr.bf16.mxu0 0
      %713 = vmatpush1.bf16.msra.mxu0 0
      %714 = vmatprep.subr.bf16.mxu0 0
      %715 = vmatpush1.bf16.msra.mxu0 0
      %716 = vmatprep.subr.bf16.mxu0 0
      %717 = vmatpush1.bf16.msra.mxu0 0
      %718 = vmatprep.subr.bf16.mxu0 0
      %719 = vmatpush1.bf16.msra.mxu0 0
      %720 = vmatprep.subr.bf16.mxu0 0
      %721 = vmatpush1.bf16.msra.mxu0 0
      %722 = vmatprep.subr.bf16.mxu0 0
      %723 = vmatpush1.bf16.msra.mxu0 0
      %724 = vmatprep.mubr.bf16.mxu0 0
      %725 = vmatmul.mubr.bf16.gmra.mrb[0].mxu0 %v669
      %v726 = vpop.f32.mrb[0].mxu0
      %v727 = vadd.f32 0.0, %v726
      %v728 = vpop.f32.mrb[0].mxu0
      %v729 = vpop.f32.mrb[0].mxu0
      %v730 = vadd.f32 0.0, %v729
      %v731 = vpop.f32.mrb[0].mxu0
      %732 = vmatprep.mubr.bf16.mxu0 0
      %733 = vmatmul.mubr.bf16.gmra.mrb[0].mxu0 %v672
      %v734 = vpop.f32.mrb[0].mxu0
      %v735 = vadd.f32 0.0, %v734
      %v736 = vpop.f32.mrb[0].mxu0
      %v737 = vpop.f32.mrb[0].mxu0
      %v738 = vadd.f32 0.0, %v737
      %v739 = vpop.f32.mrb[0].mxu0
      %740 = vmatprep.mubr.bf16.mxu0 0
      %741 = vmatmul.mubr.bf16.gmra.mrb[0].mxu0 %v675
      %v742 = vpop.f32.mrb[0].mxu0
      %v743 = vadd.f32 0.0, %v742
      %v744 = vpop.f32.mrb[0].mxu0
      %v745 = vpop.f32.mrb[0].mxu0
      %v746 = vadd.f32 0.0, %v745
      %v747 = vpop.f32.mrb[0].mxu0
      %748 = vmatprep.mubr.bf16.mxu0 0
      %749 = vmatmul.mubr.bf16.gmra.mrb[0].mxu0 %v678
      %v750 = vpop.f32.mrb[0].mxu0
      %v751 = vadd.f32 0.0, %v750
      %v752 = vpop.f32.mrb[0].mxu0
      %v753 = vpop.f32.mrb[0].mxu0
      %v754 = vadd.f32 0.0, %v753
      %v755 = vpop.f32.mrb[0].mxu0
      %756 = vmatprep.mubr.bf16.mxu0 0
      %757 = vmatmul.mubr.bf16.gmra.mrb[0].mxu0 %v681
      %v758 = vpop.f32.mrb[0].mxu0
      %v759 = vadd.f32 0.0, %v758
      %v760 = vpop.f32.mrb[0].mxu0
      %v761 = vpop.f32.mrb[0].mxu0
      %v762 = vadd.f32 0.0, %v761
      %v763 = vpop.f32.mrb[0].mxu0
      %764 = vmatprep.mubr.bf16.mxu0 0
      %765 = vmatmul.mubr.bf16.gmra.mrb[0].mxu0 %v684
      %v766 = vpop.f32.mrb[0].mxu0
      %v767 = vadd.f32 0.0, %v766
      %v768 = vpop.f32.mrb[0].mxu0
      %v769 = vpop.f32.mrb[0].mxu0
      %v770 = vadd.f32 0.0, %v769
      %v771 = vpop.f32.mrb[0].mxu0
      %772 = vmatprep.mubr.bf16.mxu0 0
      %773 = vmatmul.mubr.bf16.gmra.mrb[0].mxu0 %v687
      %v774 = vpop.f32.mrb[0].mxu0
      %v775 = vadd.f32 0.0, %v774
      %v776 = vpop.f32.mrb[0].mxu0
      %v777 = vpop.f32.mrb[0].mxu0
      %v778 = vadd.f32 0.0, %v777
      %v779 = vpop.f32.mrb[0].mxu0
      %780 = vmatprep.mubr.bf16.mxu0 0
      %781 = vmatmul.mubr.bf16.gmra.mrb[0].mxu0 %v690
      %v782 = vpop.f32.mrb[0].mxu0
      %v783 = vadd.f32 0.0, %v782
      %v784 = vpop.f32.mrb[0].mxu0
      %v785 = vpop.f32.mrb[0].mxu0
      %v786 = vadd.f32 0.0, %v785
      %v787 = vpop.f32.mrb[0].mxu0
      %788 = vdwg.mxu0
      %v789 = vpack.c.bf16 %v730, %v727
      %v790 = vpack.c.bf16 %v738, %v735
      %v791 = vpack.c.bf16 %v746, %v743
      %v792 = vpack.c.bf16 %v754, %v751
      %v793 = vpack.c.bf16 %v762, %v759
      %v794 = vpack.c.bf16 %v770, %v767
      %v795 = vpack.c.bf16 %v778, %v775
      %v796 = vpack.c.bf16 %v786, %v783
      %v797 = vld [vmem:[%s5] sm:$0x1]
      %v799 = vlaneseq
      %v800 = vshrl.u32 %v799, 7
      %v801 = vsub.s32 0, %v800
      %v802 = vrot.slane %v797, %v801
      %804 = vmatprep.subr.bf16.mxu0 0
      %805 = vmatpush1.bf16.msra.mxu0 %v789
      %806 = vmatprep.subr.bf16.mxu0 0
      %807 = vmatpush1.bf16.msra.mxu0 %v790
      %808 = vmatprep.subr.bf16.mxu0 0
      %809 = vmatpush1.bf16.msra.mxu0 %v791
      %810 = vmatprep.subr.bf16.mxu0 0
      %811 = vmatpush1.bf16.msra.mxu0 %v792
      %812 = vmatprep.subr.bf16.mxu0 0
      %813 = vmatpush1.bf16.msra.mxu0 %v793
      %814 = vmatprep.subr.bf16.mxu0 0
      %815 = vmatpush1.bf16.msra.mxu0 %v794
      %816 = vmatprep.subr.bf16.mxu0 0
      %817 = vmatpush1.bf16.msra.mxu0 %v795
      %818 = vmatprep.subr.bf16.mxu0 0
      %819 = vmatpush1.bf16.msra.mxu0 %v796
      %820 = vmatprep.subr.bf16.mxu0 0
      %821 = vmatpush1.bf16.msra.mxu0 0
      %822 = vmatprep.subr.bf16.mxu0 0
      %823 = vmatpush1.bf16.msra.mxu0 0
      %824 = vmatprep.subr.bf16.mxu0 0
      %825 = vmatpush1.bf16.msra.mxu0 0
      %826 = vmatprep.subr.bf16.mxu0 0
      %827 = vmatpush1.bf16.msra.mxu0 0
      %828 = vmatprep.subr.bf16.mxu0 0
      %829 = vmatpush1.bf16.msra.mxu0 0
      %830 = vmatprep.subr.bf16.mxu0 0
      %831 = vmatpush1.bf16.msra.mxu0 0
      %832 = vmatprep.subr.bf16.mxu0 0
      %833 = vmatpush1.bf16.msra.mxu0 0
      %834 = vmatprep.subr.bf16.mxu0 0
      %835 = vmatpush1.bf16.msra.mxu0 0
      %836 = vmatprep.mubr.bf16.mxu0 0
      %837 = vmatmul.mubr.bf16.gmra.mrb[0].mxu0 %v522
      %v838 = vpop.f32.mrb[0].mxu0
      %v839 = vadd.f32 %v802, %v838
      %v840 = vpop.f32.mrb[0].mxu0
      %v841 = vpop.f32.mrb[0].mxu0
      %v842 = vadd.f32 %v802, %v841
      %v843 = vpop.f32.mrb[0].mxu0
      %844 = vmatprep.mubr.bf16.mxu0 0
      %845 = vmatmul.mubr.bf16.gmra.mrb[0].mxu0 %v523
      %v846 = vpop.f32.mrb[0].mxu0
      %v847 = vadd.f32 %v802, %v846
      %v848 = vpop.f32.mrb[0].mxu0
      %v849 = vpop.f32.mrb[0].mxu0
      %v850 = vadd.f32 %v802, %v849
      %v851 = vpop.f32.mrb[0].mxu0
      %852 = vmatprep.mubr.bf16.mxu0 0
      %853 = vmatmul.mubr.bf16.gmra.mrb[0].mxu0 %v524
      %v854 = vpop.f32.mrb[0].mxu0
      %v855 = vadd.f32 %v802, %v854
      %v856 = vpop.f32.mrb[0].mxu0
      %v857 = vpop.f32.mrb[0].mxu0
      %v858 = vadd.f32 %v802, %v857
      %v859 = vpop.f32.mrb[0].mxu0
      %860 = vmatprep.mubr.bf16.mxu0 0
      %861 = vmatmul.mubr.bf16.gmra.mrb[0].mxu0 %v525
      %v862 = vpop.f32.mrb[0].mxu0
      %v863 = vadd.f32 %v802, %v862
      %v864 = vpop.f32.mrb[0].mxu0
      %v865 = vpop.f32.mrb[0].mxu0
      %v866 = vadd.f32 %v802, %v865
      %v867 = vpop.f32.mrb[0].mxu0
      %868 = vmatprep.mubr.bf16.mxu0 0
      %869 = vmatmul.mubr.bf16.gmra.mrb[0].mxu0 %v526
      %v870 = vpop.f32.mrb[0].mxu0
      %v871 = vadd.f32 %v802, %v870
      %v872 = vpop.f32.mrb[0].mxu0
      %v873 = vpop.f32.mrb[0].mxu0
      %v874 = vadd.f32 %v802, %v873
      %v875 = vpop.f32.mrb[0].mxu0
      %876 = vmatprep.mubr.bf16.mxu0 0
      %877 = vmatmul.mubr.bf16.gmra.mrb[0].mxu0 %v527
      %v878 = vpop.f32.mrb[0].mxu0
      %v879 = vadd.f32 %v802, %v878
      %v880 = vpop.f32.mrb[0].mxu0
      %v881 = vpop.f32.mrb[0].mxu0
      %v882 = vadd.f32 %v802, %v881
      %v883 = vpop.f32.mrb[0].mxu0
      %884 = vmatprep.mubr.bf16.mxu0 0
      %885 = vmatmul.mubr.bf16.gmra.mrb[0].mxu0 %v528
      %v886 = vpop.f32.mrb[0].mxu0
      %v887 = vadd.f32 %v802, %v886
      %v888 = vpop.f32.mrb[0].mxu0
      %v889 = vpop.f32.mrb[0].mxu0
      %v890 = vadd.f32 %v802, %v889
      %v891 = vpop.f32.mrb[0].mxu0
      %892 = vmatprep.mubr.bf16.mxu0 0
      %893 = vmatmul.mubr.bf16.gmra.mrb[0].mxu0 %v529
      %v894 = vpop.f32.mrb[0].mxu0
      %v895 = vadd.f32 %v802, %v894
      %v896 = vpop.f32.mrb[0].mxu0
      %v897 = vpop.f32.mrb[0].mxu0
      %v898 = vadd.f32 %v802, %v897
      %v899 = vpop.f32.mrb[0].mxu0
      %900 = vdwg.mxu0
      %vm901 = vcmask 31744
      %v902 = vsel %vm901, %v839, -inf
      %v903 = vrot.slane %v902, 4
      %v904 = vmax.f32 %v902, %v903
      %v905 = vrot.slane %v904, 2
      %v906 = vmax.f32 %v904, %v905
      %v907 = vrot.slane %v906, 1
      %v908 = vmax.f32 %v906, %v907
      %v909 = vsel %vm901, %v842, -inf
      %v910 = vrot.slane %v909, 4
      %v911 = vmax.f32 %v909, %v910
      %v912 = vrot.slane %v911, 2
      %v913 = vmax.f32 %v911, %v912
      %v914 = vrot.slane %v913, 1
      %v915 = vmax.f32 %v913, %v914
      %v916 = vsel %vm901, %v847, -inf
      %v917 = vrot.slane %v916, 4
      %v918 = vmax.f32 %v916, %v917
      %v919 = vrot.slane %v918, 2
      %v920 = vmax.f32 %v918, %v919
      %v921 = vrot.slane %v920, 1
      %v922 = vmax.f32 %v920, %v921
      %v923 = vsel %vm901, %v850, -inf
      %v924 = vrot.slane %v923, 4
      %v925 = vmax.f32 %v923, %v924
      %v926 = vrot.slane %v925, 2
      %v927 = vmax.f32 %v925, %v926
      %v928 = vrot.slane %v927, 1
      %v929 = vmax.f32 %v927, %v928
      %v930 = vsel %vm901, %v855, -inf
      %v931 = vrot.slane %v930, 4
      %v932 = vmax.f32 %v930, %v931
      %v933 = vrot.slane %v932, 2
      %v934 = vmax.f32 %v932, %v933
      %v935 = vrot.slane %v934, 1
      %v936 = vmax.f32 %v934, %v935
      %v937 = vsel %vm901, %v858, -inf
      %v938 = vrot.slane %v937, 4
      %v939 = vmax.f32 %v937, %v938
      %v940 = vrot.slane %v939, 2
      %v941 = vmax.f32 %v939, %v940
      %v942 = vrot.slane %v941, 1
      %v943 = vmax.f32 %v941, %v942
      %v944 = vsel %vm901, %v863, -inf
      %v945 = vrot.slane %v944, 4
      %v946 = vmax.f32 %v944, %v945
      %v947 = vrot.slane %v946, 2
      %v948 = vmax.f32 %v946, %v947
      %v949 = vrot.slane %v948, 1
      %v950 = vmax.f32 %v948, %v949
      %v951 = vsel %vm901, %v866, -inf
      %v952 = vrot.slane %v951, 4
      %v953 = vmax.f32 %v951, %v952
      %v954 = vrot.slane %v953, 2
      %v955 = vmax.f32 %v953, %v954
      %v956 = vrot.slane %v955, 1
      %v957 = vmax.f32 %v955, %v956
      %v958 = vsel %vm901, %v871, -inf
      %v959 = vrot.slane %v958, 4
      %v960 = vmax.f32 %v958, %v959
      %v961 = vrot.slane %v960, 2
      %v962 = vmax.f32 %v960, %v961
      %v963 = vrot.slane %v962, 1
      %v964 = vmax.f32 %v962, %v963
      %v965 = vsel %vm901, %v874, -inf
      %v966 = vrot.slane %v965, 4
      %v967 = vmax.f32 %v965, %v966
      %v968 = vrot.slane %v967, 2
      %v969 = vmax.f32 %v967, %v968
      %v970 = vrot.slane %v969, 1
      %v971 = vmax.f32 %v969, %v970
      %v972 = vsel %vm901, %v879, -inf
      %v973 = vrot.slane %v972, 4
      %v974 = vmax.f32 %v972, %v973
      %v975 = vrot.slane %v974, 2
      %v976 = vmax.f32 %v974, %v975
      %v977 = vrot.slane %v976, 1
      %v978 = vmax.f32 %v976, %v977
      %v979 = vsel %vm901, %v882, -inf
      %v980 = vrot.slane %v979, 4
      %v981 = vmax.f32 %v979, %v980
      %v982 = vrot.slane %v981, 2
      %v983 = vmax.f32 %v981, %v982
      %v984 = vrot.slane %v983, 1
      %v985 = vmax.f32 %v983, %v984
      %v986 = vsel %vm901, %v887, -inf
      %v987 = vrot.slane %v986, 4
      %v988 = vmax.f32 %v986, %v987
      %v989 = vrot.slane %v988, 2
      %v990 = vmax.f32 %v988, %v989
      %v991 = vrot.slane %v990, 1
      %v992 = vmax.f32 %v990, %v991
      %v993 = vsel %vm901, %v890, -inf
      %v994 = vrot.slane %v993, 4
      %v995 = vmax.f32 %v993, %v994
      %v996 = vrot.slane %v995, 2
      %v997 = vmax.f32 %v995, %v996
      %v998 = vrot.slane %v997, 1
      %v999 = vmax.f32 %v997, %v998
      %v1000 = vsel %vm901, %v895, -inf
      %v1001 = vrot.slane %v1000, 4
      %v1002 = vmax.f32 %v1000, %v1001
      %v1003 = vrot.slane %v1002, 2
      %v1004 = vmax.f32 %v1002, %v1003
      %v1005 = vrot.slane %v1004, 1
      %v1006 = vmax.f32 %v1004, %v1005
      %v1007 = vsel %vm901, %v898, -inf
      %v1008 = vrot.slane %v1007, 4
      %v1009 = vmax.f32 %v1007, %v1008
      %v1010 = vrot.slane %v1009, 2
      %v1011 = vmax.f32 %v1009, %v1010
      %v1012 = vrot.slane %v1011, 1
      %v1013 = vmax.f32 %v1011, %v1012
      %v1014 = vmax.f32 %v908, 0.0
      %v1015 = vmax.f32 %v915, 0.0
      %v1016 = vmax.f32 %v922, 0.0
      %v1017 = vmax.f32 %v929, 0.0
      %v1018 = vmax.f32 %v936, 0.0
      %v1019 = vmax.f32 %v943, 0.0
      %v1020 = vmax.f32 %v950, 0.0
      %v1021 = vmax.f32 %v957, 0.0
      %v1022 = vmax.f32 %v964, 0.0
      %v1023 = vmax.f32 %v971, 0.0
      %v1024 = vmax.f32 %v978, 0.0
      %v1025 = vmax.f32 %v985, 0.0
      %v1026 = vmax.f32 %v992, 0.0
      %v1027 = vmax.f32 %v999, 0.0
      %v1028 = vmax.f32 %v1006, 0.0
      %v1029 = vmax.f32 %v1013, 0.0
      %vm1046 = vcmask 1041409
      %v1047 = vsel %vm1046, %v1015, %v1014
      %vm1048 = vcmask 1042434
      %v1049 = vsel %vm1048, %v1016, %v1047
      %vm1050 = vcmask 1043459
      %v1051 = vsel %vm1050, %v1017, %v1049
      %vm1052 = vcmask 1044484
      %v1053 = vsel %vm1052, %v1018, %v1051
      %vm1054 = vcmask 1045509
      %v1055 = vsel %vm1054, %v1019, %v1053
      %vm1056 = vcmask 1046534
      %v1057 = vsel %vm1056, %v1020, %v1055
      %vm1058 = vcmask 1047559
      %v1059 = vsel %vm1058, %v1021, %v1057
      %v1060 = vsel %vm1046, %v1023, %v1022
      %v1061 = vsel %vm1048, %v1024, %v1060
      %v1062 = vsel %vm1050, %v1025, %v1061
      %v1063 = vsel %vm1052, %v1026, %v1062
      %v1064 = vsel %vm1054, %v1027, %v1063
      %v1065 = vsel %vm1056, %v1028, %v1064
      %v1066 = vsel %vm1058, %v1029, %v1065
      %1069 = vst.msk [vmem:[%s273] sm:$0xff] %vm901, %v1059
      %1070 = vst.msk [vmem:[%s273 + $0x8] sm:$0xff] %vm901, %v1066
      %s1071 = smul.u32 2, %s17
      %p1072 = scmp.lt.s32.totalorder %s1071, 3
      %s1073 = scalar_select %p1072, %s1071, 3
      %s1074 = smul.addr %s1073, 8
      %s1075 = scalar_lea.vmem %s6, %s1074
      // Predicated region
      $region45: #{tpu_custom_call.1} parent=43 // pred_check
        %p1076 = pneg %p171
      $region46: #{tpu_custom_call.1} parent=43 // pred_check_branch
        %1078 = sbr.rel (%p1076) target = $region48
      $region47: #{tpu_custom_call.1} parent=43 // pred_region
        %s1079 = smul.u32 2, %s17
      $region48: #{tpu_custom_call.1} parent=43 // pred_fallthru
        _
    $region44: #{tpu_custom_call.1} parent=5 // pred_fallthru
      _
    %p1080 = scmp.le.s32.totalorder 2, %s12
    // Predicated region
    $region49: #{tpu_custom_call.1} parent=5 // pred_check
      %p1081 = pneg %p1080
    $region50: #{tpu_custom_call.1} parent=5 // pred_check_branch
      %1083 = sbr.rel (%p1081) target = $region52
    $region51: #{tpu_custom_call.1} parent=5 // pred_region
      %s1084 = ssub.s32 %s12, 2
      // Predicated region
      $region53: #{tpu_custom_call.1} parent=51 // pred_check
        %p1085 = pneg %p177
      $region54: #{tpu_custom_call.1} parent=51 // pred_check_branch
        %1087 = sbr.rel (%p1085) target = $region56
      $region55: #{tpu_custom_call.1} parent=51 // pred_region
        %s1088 = smul.u32 2, %s18
        %p1089 = scmp.lt.s32.totalorder %s1088, 3
        %s1090 = scalar_select %p1089, %s1088, 3
        %s1091 = smul.addr %s1090, 8
        %s1092 = scalar_lea.vmem %s6, %s1091
      $region56: #{tpu_custom_call.1} parent=51 // pred_fallthru
        _
    $region52: #{tpu_custom_call.1} parent=5 // pred_fallthru
      _
  $region6: #{tpu_custom_call.1} parent=0 // loop_footer
    %s16 = sadd.s32 1, %s12
  $region7: #{tpu_custom_call.1} parent=0 // loop_footer_branch
    %11 = sbr.rel target = $region3
  $region8: #{tpu_custom_call.1} parent=0 // loop_exit
    _

</llo_original>
